<compile_context>
chip_gen: v5e
topology: v5e:2x2
jax: 0.10.0
libtpu: 0.0.40
codegen_flags: <defaults>
</compile_context>

<pallas_src>
import jax
import jax.numpy as jnp
import numpy as np
from jax.experimental import pallas as pl
from jax.experimental.pallas import tpu as pltpu

# Module hyper-parameters (deterministic, from __init__ defaults).
INTEGER_BITS = 4
FRACTIONAL_BITS = 12
FIXED_POINT_SCALE = float(2 ** FRACTIONAL_BITS)   # 4096.0
CLAMP_MIN = -4.0
CLAMP_MAX = 4.0

_TARGET_BLOCK_ELEMS = 1024 * 1024       # ~4 MiB of f32 per tile
_VMEM_LIMIT_BYTES = 40 * 1024 * 1024    # 2x(in) + 2x(out) 4 MiB buffers + headroom
                                        # (safe on v5e/v6e 128 MiB and v7x 64 MiB VMEM)


def _silu_approx_math(x):
    """All-f32 replica of the PyTorch forward (including the float16 cast effect)."""
    x_clipped = jnp.clip(x, CLAMP_MIN, CLAMP_MAX)
    neg = x_clipped <= 0.0

    # float -> Q4.12 fixed point; result is an exact integer in f32 (|.| <= 16384).
    x_fixed = jnp.round(x_clipped * FIXED_POINT_SCALE)
    # == where(neg, -x_fixed, x_fixed): sign(x_fixed) follows sign(x_clipped).
    z_fixed = jnp.abs(x_fixed)

    # approx_sigmoid_value: g(x) = 0.5*(0.25*x - 1)^2, entirely in f32.
    z = jnp.floor(z_fixed * 0.25) - FIXED_POINT_SCALE      # (z_fixed >> 2) - 4096
    tmp = jnp.floor((z * z) * (1.0 / 8192.0))               # (z*z) >> 13, in [0, 2048]
    # z*z <= 2^24, so the square and the power-of-two scales are exact in f32.

    # Emulate torch's `.to(torch.float16)` of y_fixed:
    #  * neg branch: y = tmp in [0, 2048]            -> exact in fp16.
    #  * pos branch: y = 4096 - tmp in [2048, 4096]  -> rounds to the nearest
    #    multiple of 2, ties-to-even; round(y*0.5)*2 reproduces this exactly.
    y_pos = FIXED_POINT_SCALE - tmp
    y_pos16 = jnp.round(y_pos * 0.5) * 2.0
    y16 = jnp.where(neg, tmp, y_pos16)

    # /4096 is an exact power-of-two scale (also exact in fp16); the final
    # multiply is f32, matching torch's f32 * f16 -> f32 promotion.
    sigmoid_approx = y16 * (1.0 / FIXED_POINT_SCALE)
    silu_approx = x_clipped * sigmoid_approx
    return jnp.where(x > CLAMP_MAX, x, silu_approx)


def _silu_approx_kernel(x_ref, o_ref):
    o_ref[...] = _silu_approx_math(x_ref[...])


def _tile_rows(rows, lanes):
    """Row-tile targeting ~4 MiB f32 per block (multiple of 8 when tiled)."""
    cap = max(8, (_TARGET_BLOCK_ELEMS // lanes) // 8 * 8)
    return rows if rows <= cap else cap


def _run_elementwise(x2d):
    rows, lanes = x2d.shape
    tm = _tile_rows(rows, lanes)
    # If tm does not divide rows, the padded boundary block is harmless:
    # all-f32 elementwise math, and OOB writes are dropped.
    grid = (pl.cdiv(rows, tm),)
    n = rows * lanes
    return pl.pallas_call(
        _silu_approx_kernel,
        out_shape=jax.ShapeDtypeStruct((rows, lanes), x2d.dtype),
        grid=grid,
        in_specs=[pl.BlockSpec((tm, lanes), lambda i: (i, 0))],
        out_specs=pl.BlockSpec((tm, lanes), lambda i: (i, 0)),
        cost_estimate=pl.CostEstimate(
            flops=20 * n, transcendentals=0, bytes_accessed=8 * n),
        compiler_params=pltpu.CompilerParams(
            # "parallel" lets the megacore/v7x shard row tiles across TCs.
            dimension_semantics=("parallel",),
            vmem_limit_bytes=_VMEM_LIMIT_BYTES,
        ),
    )(x2d)


@jax.jit
def silu_approximation(x):
    """Elementwise SiLU approximation. x: float32, any shape (NCHW in the demo)."""
    orig_shape = x.shape
    n = x.size
    flat = x.reshape(-1)

    n_main = (n // 128) * 128
    if n_main == 0:
        # Tiny (<128 element) input: plain XLA, no kernel launch needed.
        return _silu_approx_math(x)

    # Widest lane count (multiple of 128, <= 1024) dividing the aligned prefix.
    lanes = 128
    for cand in (1024, 512, 256):
        if n_main % cand == 0:
            lanes = cand
            break
    rows = n_main // lanes
    main_out = _run_elementwise(flat[:n_main].reshape(rows, lanes)).reshape(-1)

    if n_main == n:
        return main_out.reshape(orig_shape)

    # Ragged (<128 element) tail: handled by plain XLA; no full-array pad/slice.
    tail_out = _silu_approx_math(flat[n_main:])
    return jnp.concatenate([main_out, tail_out]).reshape(orig_shape)


def _reference_numpy(x):
    """Pure-numpy replica of the PyTorch forward (including the float16 cast)."""
    x = np.asarray(x, dtype=np.float32)
    xc = np.clip(x, CLAMP_MIN, CLAMP_MAX)
    xf = np.rint(xc * 4096.0).astype(np.int32)   # rint = round half-to-even
    neg = xc <= 0.0
    zf = np.where(neg, -xf, xf)
    z = (zf >> 2) - 4096
    tmp = (z * z) >> FRACTIONAL_BITS
    tmp = tmp >> 1
    yf = np.where(neg, tmp, 4096 - tmp)
    sig = (yf.astype(np.float16) / np.float16(4096.0)).astype(np.float32)
    silu = xc * sig
    return np.where(x > CLAMP_MAX, x, silu).astype(np.float32)


if __name__ == "__main__":
    key = jax.random.PRNGKey(0)

    # Small NCHW input consistent with a conv-style activation map
    # (2*4*16*16 = 2048 elements -> zero-copy fast path, single 2x1024 block).
    x = jax.random.normal(key, (2, 4, 16, 16), dtype=jnp.float32) * 3.0
    out = jax.block_until_ready(silu_approximation(x))
    assert out.shape == x.shape and out.dtype == x.dtype
    np.testing.assert_allclose(
        np.asarray(out), _reference_numpy(np.asarray(x)), rtol=0, atol=1e-6
    )

    # Also exercise the ragged-tail path (1155 elements, not a multiple of 128).
    x2 = jax.random.normal(jax.random.PRNGKey(1), (3, 5, 7, 11), jnp.float32) * 3.0
    out2 = jax.block_until_ready(silu_approximation(x2))
    np.testing.assert_allclose(
        np.asarray(out2), _reference_numpy(np.asarray(x2)), rtol=0, atol=1e-6
    )

    print("KERNEL_OK")
</pallas_src>

<mosaic_0001>
module attributes {stable_mosaic.version = 11 : i64} {
  func.func @_silu_approx_kernel(%arg0: i32, %arg1: memref<2x1024xf32, #tpu.memory_space<vmem>>, %arg2: memref<2x1024xf32, #tpu.memory_space<vmem>>) attributes {dimension_semantics = [#tpu.dimension_semantics<parallel>], iteration_bounds = array<i64: 1>, scalar_prefetch = 0 : i64, scratch_operands = 0 : i64, tpu.core_type = #tpu.core_type<tc>, window_params = [{transform_indices = @transform_0, window_bounds = array<i64: 2, 1024>}, {transform_indices = @transform_1, window_bounds = array<i64: 2, 1024>}]} {
    %c0 = arith.constant 0 : index
    %c0_0 = arith.constant 0 : index
    %0 = vector.load %arg1[%c0, %c0_0] : memref<2x1024xf32, #tpu.memory_space<vmem>>, vector<2x1024xf32>
    %cst = arith.constant -4.000000e+00 : f32
    %cst_1 = arith.constant 4.000000e+00 : f32
    %1 = vector.broadcast %cst : f32 to vector<2x1024xf32>
    %2 = arith.maximumf %1, %0 : vector<2x1024xf32>
    %3 = vector.broadcast %cst_1 : f32 to vector<2x1024xf32>
    %4 = arith.minimumf %3, %2 : vector<2x1024xf32>
    %cst_2 = arith.constant 0.000000e+00 : f32
    %5 = vector.broadcast %cst_2 : f32 to vector<2x1024xf32>
    %6 = arith.cmpf ole, %4, %5 : vector<2x1024xf32>
    %cst_3 = arith.constant 4.096000e+03 : f32
    %7 = vector.broadcast %cst_3 : f32 to vector<2x1024xf32>
    %8 = arith.mulf %4, %7 : vector<2x1024xf32>
    %9 = math.roundeven %8 : vector<2x1024xf32>
    %10 = math.absf %9 : vector<2x1024xf32>
    %cst_4 = arith.constant 2.500000e-01 : f32
    %11 = vector.broadcast %cst_4 : f32 to vector<2x1024xf32>
    %12 = arith.mulf %10, %11 : vector<2x1024xf32>
    %13 = math.floor %12 : vector<2x1024xf32>
    %cst_5 = arith.constant 4.096000e+03 : f32
    %14 = vector.broadcast %cst_5 : f32 to vector<2x1024xf32>
    %15 = arith.subf %13, %14 : vector<2x1024xf32>
    %16 = arith.mulf %15, %15 : vector<2x1024xf32>
    %cst_6 = arith.constant 1.22070313E-4 : f32
    %17 = vector.broadcast %cst_6 : f32 to vector<2x1024xf32>
    %18 = arith.mulf %16, %17 : vector<2x1024xf32>
    %19 = math.floor %18 : vector<2x1024xf32>
    %cst_7 = arith.constant 4.096000e+03 : f32
    %20 = vector.broadcast %cst_7 : f32 to vector<2x1024xf32>
    %21 = arith.subf %20, %19 : vector<2x1024xf32>
    %cst_8 = arith.constant 5.000000e-01 : f32
    %22 = vector.broadcast %cst_8 : f32 to vector<2x1024xf32>
    %23 = arith.mulf %21, %22 : vector<2x1024xf32>
    %24 = math.roundeven %23 : vector<2x1024xf32>
    %cst_9 = arith.constant 2.000000e+00 : f32
    %25 = vector.broadcast %cst_9 : f32 to vector<2x1024xf32>
    %26 = arith.mulf %24, %25 : vector<2x1024xf32>
    %27 = arith.select %6, %19, %26 : vector<2x1024xi1>, vector<2x1024xf32>
    %cst_10 = arith.constant 2.44140625E-4 : f32
    %28 = vector.broadcast %cst_10 : f32 to vector<2x1024xf32>
    %29 = arith.mulf %27, %28 : vector<2x1024xf32>
    %30 = arith.mulf %4, %29 : vector<2x1024xf32>
    %cst_11 = arith.constant 4.000000e+00 : f32
    %31 = vector.broadcast %cst_11 : f32 to vector<2x1024xf32>
    %32 = arith.cmpf ogt, %0, %31 : vector<2x1024xf32>
    %33 = arith.select %32, %0, %30 : vector<2x1024xi1>, vector<2x1024xf32>
    %c0_12 = arith.constant 0 : index
    %c0_13 = arith.constant 0 : index
    %34 = vector.load %arg2[%c0_12, %c0_13] : memref<2x1024xf32, #tpu.memory_space<vmem>>, vector<2x1024xf32>
    tpu.vector_store %arg2[%c0_12, %c0_13], %33 {strides = array<i32>} : memref<2x1024xf32, #tpu.memory_space<vmem>>, vector<2x1024xf32>,
    return
  }
  func.func @transform_0(%arg0: i32) -> (i32, i32) {
    %c0_i32 = arith.constant 0 : i32
    %c0_i32_0 = arith.constant 0 : i32
    return %arg0, %c0_i32 : i32, i32
  }
  func.func @transform_1(%arg0: i32) -> (i32, i32) {
    %c0_i32 = arith.constant 0 : i32
    %c0_i32_0 = arith.constant 0 : i32
    return %arg0, %c0_i32 : i32, i32
  }
}

</mosaic_0001>

<llo_original>
// kernel: silu_approximation.1
$region0: #{silu_approximation.1}
  #allocation0 [shape = 'u32[]', space=smem, size = 0x4, offset = 0x4, fixed_abs, tag = 'smem constant byte address 0x4 - core index']
  #allocation1 [shape = 'u32[72,128]{1,0:T(1,128)}', space=vmem, size = 0x9000, scoped, tag = 'internal scratch']
  %s0 = inlined_call_operand.vmem [shape: f32[2,1024], index: 0, kind: input, shape index: {}]
  %s1 = inlined_call_operand.vmem [shape: f32[2,1024], index: 1, kind: output, shape index: {}]
  %s2 = sld [smem:[#allocation0]]
  $region14: #{silu_approximation.1} parent=0
    _
  %s4 = ssub.s32 1, %s2
  %s5 = scalar_select 0, %s4, %s2
  // Predicated region
  $region2: #{silu_approximation.1} parent=0 // pred_check
    _
  $region3: #{silu_approximation.1} parent=0 // pred_check_branch
    %7 = sbr.rel (0) target = $region5
  $region4: #{silu_approximation.1} parent=0 // pred_region
    _
  $region5: #{silu_approximation.1} parent=0 // pred_fallthru
    _
  %v8 = vld [vmem:[%s0] sm:$0xff]
  %v9 = vld [vmem:[%s0 + $0x8] sm:$0xff]
  %v10 = vmax.f32 %v8, -4.0
  %v11 = vmax.f32 %v9, -4.0
  %v12 = vmin.f32 %v10, 4.0
  %v13 = vmin.f32 %v11, 4.0
  %vm14 = vcmp.le.f32.partialorder %v12, 0.0
  %vm15 = vcmp.le.f32.partialorder %v13, 0.0
  %v16 = vmul.f32 %v12, 4096.0
  %v17 = vmul.f32 %v13, 4096.0
  %v18 = vround.ne.pseudo %v16
  %v19 = vround.ne.pseudo %v17
  %v20 = vand.u32 2147483647, %v18
  %v21 = vand.u32 2147483647, %v19
  %v22 = vmul.f32 %v20, 0.25
  %v23 = vmul.f32 %v21, 0.25
  %v24 = vfloor.f32 %v22
  %v25 = vfloor.f32 %v23
  %v26 = vsub.f32 %v24, 4096.0
  %v27 = vsub.f32 %v25, 4096.0
  %v28 = vmul.f32 %v26, %v26
  %v29 = vmul.f32 %v27, %v27
  %v30 = vmul.f32 %v28, 0.00012207031
  %v31 = vmul.f32 %v29, 0.00012207031
  %v32 = vfloor.f32 %v30
  %v33 = vfloor.f32 %v31
  %v34 = vsub.f32 4096.0, %v32
  %v35 = vsub.f32 4096.0, %v33
  %v36 = vmul.f32 %v34, 0.5
  %v37 = vmul.f32 %v35, 0.5
  %v38 = vround.ne.pseudo %v36
  %v39 = vround.ne.pseudo %v37
  %v40 = vmul.f32 %v38, 2.0
  %v41 = vmul.f32 %v39, 2.0
  %v42 = vsel %vm14, %v32, %v40
  %v43 = vsel %vm15, %v33, %v41
  %v44 = vmul.f32 %v42, 0.00024414063
  %v45 = vmul.f32 %v43, 0.00024414063
  %v46 = vmul.f32 %v12, %v44
  %v47 = vmul.f32 %v13, %v45
  %vm48 = vcmp.gt.f32.partialorder %v8, 4.0
  %vm49 = vcmp.gt.f32.partialorder %v9, 4.0
  %v50 = vsel %vm48, %v8, %v46
  %v51 = vsel %vm49, %v9, %v47
  %52 = vst [vmem:[%s1] sm:$0xff] %v50
  %53 = vst [vmem:[%s1 + $0x8] sm:$0xff] %v51
  // Predicated region
  $region6: #{silu_approximation.1} parent=0 // pred_check
    _
  $region7: #{silu_approximation.1} parent=0 // pred_check_branch
    %55 = sbr.rel (0) target = $region9
  $region8: #{silu_approximation.1} parent=0 // pred_region
    _
  $region9: #{silu_approximation.1} parent=0 // pred_fallthru
    _
  // Predicated region
  $region10: #{silu_approximation.1} parent=0 // pred_check
    _
  $region11: #{silu_approximation.1} parent=0 // pred_check_branch
    %57 = sbr.rel (0) target = $region13
  $region12: #{silu_approximation.1} parent=0 // pred_region
    _
  $region13: #{silu_approximation.1} parent=0 // pred_fallthru
    _

</llo_original>
